<compile_context>
chip_gen: v5e
topology: v5e:2x2
jax: 0.10.0
libtpu: 0.0.40
codegen_flags: <defaults>
</compile_context>

<pallas_src>
import functools
import math

import jax
import jax.numpy as jnp
import numpy as np
from jax.experimental import pallas as pl
from jax.experimental.pallas import tpu as pltpu


def _round_up(x, n):
    return ((x + n - 1) // n) * n


def _navigator_kernel(x_ref, w1_ref, b1_ref, w2_ref, b2_ref, y_ref, z_ref,
                      *, th, wo, stride, cdt):
    """One grid step = `th` output rows x `wo` output columns of one image.

    x_ref : (1, th + 2//s, s*s, wq, cin_pad)  halo'd, stride-rearranged tile
    w1_ref: (9, cin_pad, 128)   3x3 weight, tap-major, VMEM resident
    b1_ref: (1, 128)   w2_ref: (128, cout_pad)   b2_ref: (1, cout_pad)
    y_ref : (th*wo, 128)        z_ref : (th*wo, cout_pad)
    """
    s = stride
    acc = None
    # 3x3 conv = 9 shifted matmuls; all slice starts are static Python ints.
    for kh in range(3):
        for kw in range(3):
            tap = kh * 3 + kw
            q = (kh % s) * s + (kw % s)          # remainder plane (hr, wr)
            xt = x_ref[0, pl.ds(kh // s, th), q, pl.ds(kw // s, wo), :]
            xt = xt.reshape(th * wo, -1)         # (th*wo, cin_pad)
            part = jnp.dot(xt, w1_ref[tap], preferred_element_type=jnp.float32)
            acc = part if acc is None else acc + part

    # Bias + ReLU, staged through y_ref so the f32 intermediate is not kept
    # live in vregs across the second matmul.
    y_ref[...] = jnp.maximum(acc + b1_ref[...], 0.0).astype(y_ref.dtype)

    z = jnp.dot(y_ref[...].astype(cdt), w2_ref[...],
                preferred_element_type=jnp.float32) + b2_ref[...]
    z_ref[...] = z.astype(z_ref.dtype)


@functools.partial(jax.jit, static_argnames=("stride", "row_tile", "compute_dtype"))
def navigator_branch_forward(x_nchw, w_down, b_down, w_tidy, b_tidy, stride,
                             *, row_tile=None, compute_dtype="float32"):
    """x_nchw: (N, Cin, H, W) f32.
       w_down: (128, Cin, 3, 3), b_down: (128,)   -- PyTorch conv layout
       w_tidy: (Cout, 128, 1, 1), b_tidy: (Cout,)
       Returns (z, y): z (N, Cout*Ho*Wo) NCHW-flatten order, y (N, 128, Ho, Wo)."""
    n, cin, h, w = x_nchw.shape
    mid = w_down.shape[0]                 # 128
    cout = w_tidy.shape[0]
    s = int(stride)
    cdt = jnp.bfloat16 if compute_dtype == "bfloat16" else jnp.float32

    ho = (h - 1) // s + 1                 # conv3x3, pad=1
    wo = (w - 1) // s + 1

    # ---- per-step output row tile (TH) --------------------------------------
    t = 8 // math.gcd(wo, 8)              # keep TH*Wo a multiple of 8
    if row_tile is not None:
        th = int(row_tile)
    else:
        th = max(1, 512 // wo)            # ~512 GEMM rows per grid step
        if n == 1 and ho >= 2:            # >=2 grid steps so both v7x TCs get work
            th = min(th, -(-ho // 2))
    th = max(1, min(th, ho))
    th = _round_up(th, t)
    nrt = -(-ho // th)                    # row tiles per image
    ho_pad = nrt * th
    halo = 2 // s                         # extra input "q-rows" per tile
    thq = th + halo
    hq = max(ho_pad + halo, -(-(h + 2) // s))
    wq = max(wo + halo, -(-(w + 2) // s))

    cin_pad = _round_up(cin, 8)
    cout_pad = _round_up(cout, 128)       # lane-dense z store

    # ---- input: NCHW -> NHWC, spatial pad, stride rearrangement, row tiles --
    x_nhwc = jnp.transpose(x_nchw, (0, 2, 3, 1)).astype(jnp.float32)
    xp = jnp.pad(x_nhwc, ((0, 0),
                          (1, hq * s - h - 1),
                          (1, wq * s - w - 1),
                          (0, cin_pad - cin)))
    # (N, hq*s, wq*s, C) -> (N, hq, hr, wq, wr, C) -> (N, hq, hr*s+wr, wq, C)
    x_re = xp.reshape(n, hq, s, wq, s, cin_pad)
    x_re = x_re.transpose(0, 1, 2, 4, 3, 5).reshape(n, hq, s * s, wq, cin_pad)
    # Duplicate the halo rows per row tile -> plain (non-overlapping) BlockSpec.
    row_idx = jnp.arange(nrt)[:, None] * th + jnp.arange(thq)[None, :]
    x_tiles = x_re[:, row_idx].reshape(n * nrt, thq, s * s, wq, cin_pad)
    x_tiles = x_tiles.astype(cdt)

    # ---- weights (tap-major (kh,kw,cin) ordering to match the kernel) -------
    w1 = jnp.transpose(w_down, (2, 3, 1, 0)).reshape(9, cin, mid)
    w1 = jnp.pad(w1, ((0, 0), (0, cin_pad - cin), (0, 0))).astype(cdt)
    b1 = b_down.reshape(1, mid).astype(jnp.float32)
    w2 = jnp.transpose(w_tidy.reshape(cout, mid), (1, 0))            # (128, Cout)
    w2 = jnp.pad(w2, ((0, 0), (0, cout_pad - cout))).astype(cdt)
    b2 = jnp.pad(b_tidy, (0, cout_pad - cout)).reshape(1, cout_pad).astype(jnp.float32)

    m_rows = th * wo                      # GEMM rows per grid step
    m_pad = n * nrt * m_rows

    kern = functools.partial(_navigator_kernel, th=th, wo=wo, stride=s, cdt=cdt)

    # ---- VMEM budget / cost hint --------------------------------------------
    itm = 2 if cdt == jnp.bfloat16 else 4
    x_blk = thq * s * s * wq * cin_pad * itm
    y_blk = m_rows * mid * 4
    z_blk = m_rows * cout_pad * 4
    w_bytes = (9 * cin_pad * mid + mid * cout_pad) * itm + (mid + cout_pad) * 4
    vmem_est = 2 * (x_blk + y_blk + z_blk) + 2 * w_bytes + (1 << 20)
    vmem_limit = int(min(96 << 20, max(32 << 20, 2 * vmem_est)))

    flops = 2 * m_pad * mid * (9 * cin_pad + cout_pad)
    bytes_accessed = int(n * nrt * x_blk + w_bytes + m_pad * (mid + cout_pad) * 4)

    y_flat, z_flat = pl.pallas_call(
        kern,
        out_shape=(jax.ShapeDtypeStruct((m_pad, mid), jnp.float32),
                   jax.ShapeDtypeStruct((m_pad, cout_pad), jnp.float32)),
        grid_spec=pltpu.PrefetchScalarGridSpec(
            num_scalar_prefetch=0,
            grid=(n, nrt),
            in_specs=[
                pl.BlockSpec((1, thq, s * s, wq, cin_pad),
                             lambda ni, ri: (ni * nrt + ri, 0, 0, 0, 0)),
                pl.BlockSpec((9, cin_pad, mid), lambda ni, ri: (0, 0, 0)),   # w1 resident
                pl.BlockSpec((1, mid), lambda ni, ri: (0, 0)),               # b1 resident
                pl.BlockSpec((mid, cout_pad), lambda ni, ri: (0, 0)),        # w2 resident
                pl.BlockSpec((1, cout_pad), lambda ni, ri: (0, 0)),          # b2 resident
            ],
            out_specs=(
                pl.BlockSpec((m_rows, mid), lambda ni, ri: (ni * nrt + ri, 0)),
                pl.BlockSpec((m_rows, cout_pad), lambda ni, ri: (ni * nrt + ri, 0)),
            ),
        ),
        compiler_params=pltpu.CompilerParams(
            dimension_semantics=("parallel", "parallel"),
            vmem_limit_bytes=vmem_limit),
        cost_estimate=pl.CostEstimate(
            flops=flops, transcendentals=0, bytes_accessed=bytes_accessed),
    )(x_tiles, w1, b1, w2, b2)

    # Back to PyTorch NCHW conventions (drop padded rows / channels).
    y = y_flat.reshape(n, ho_pad, wo, mid)[:, :ho]
    y = jnp.transpose(y, (0, 3, 1, 2))                                  # (N,128,Ho,Wo)
    z = z_flat[:, :cout].reshape(n, ho_pad, wo, cout)[:, :ho]
    z = jnp.transpose(z, (0, 3, 1, 2)).reshape(n, -1)                   # NCHW flatten
    return z, y


def _reference(x_nchw, w_down, b_down, w_tidy, b_tidy, stride):
    """Pure-JAX reference via lax.conv for validation."""
    y = jax.lax.conv_general_dilated(
        x_nchw, w_down, window_strides=(stride, stride),
        padding=((1, 1), (1, 1)),
        dimension_numbers=("NCHW", "OIHW", "NCHW"))
    y = y + b_down.reshape(1, -1, 1, 1)
    y = jnp.maximum(y, 0.0)
    z = jax.lax.conv_general_dilated(
        y, w_tidy, window_strides=(1, 1), padding="VALID",
        dimension_numbers=("NCHW", "OIHW", "NCHW"))
    z = z + b_tidy.reshape(1, -1, 1, 1)
    return z.reshape(z.shape[0], -1), y


if __name__ == "__main__":
    # Small, module-consistent shapes.
    N, Cin, H, W = 2, 4, 16, 16
    Cout = 6
    mid = 128

    key = jax.random.PRNGKey(0)
    kx, kw1, kb1, kw2, kb2 = jax.random.split(key, 5)
    x = jax.random.normal(kx, (N, Cin, H, W), dtype=jnp.float32)
    w_down = jax.random.normal(kw1, (mid, Cin, 3, 3), dtype=jnp.float32) * 0.1
    b_down = jax.random.normal(kb1, (mid,), dtype=jnp.float32) * 0.1
    w_tidy = jax.random.normal(kw2, (Cout, mid, 1, 1), dtype=jnp.float32) * 0.1
    b_tidy = jax.random.normal(kb2, (Cout,), dtype=jnp.float32) * 0.1

    # f32 path: stride=2, stride=1, and stride=1 with >1 row tiles per image.
    for stride, row_tile in ((2, None), (1, None), (1, 8)):
        z_k, y_k = navigator_branch_forward(x, w_down, b_down, w_tidy, b_tidy,
                                            stride, row_tile=row_tile)
        jax.block_until_ready((z_k, y_k))
        z_r, y_r = _reference(x, w_down, b_down, w_tidy, b_tidy, stride)
        np.testing.assert_allclose(np.asarray(y_k), np.asarray(y_r),
                                   rtol=1e-4, atol=1e-4)
        np.testing.assert_allclose(np.asarray(z_k), np.asarray(z_r),
                                   rtol=1e-4, atol=1e-4)

    # Optional bf16 fast path (inputs/weights bf16, f32 accumulation).
    z_b, y_b = navigator_branch_forward(x, w_down, b_down, w_tidy, b_tidy, 1,
                                        compute_dtype="bfloat16")
    jax.block_until_ready((z_b, y_b))
    z_r, y_r = _reference(x, w_down, b_down, w_tidy, b_tidy, 1)
    np.testing.assert_allclose(np.asarray(y_b), np.asarray(y_r), rtol=5e-2, atol=5e-2)
    np.testing.assert_allclose(np.asarray(z_b), np.asarray(z_r), rtol=5e-2, atol=5e-2)

    print("KERNEL_OK")
</pallas_src>

<mosaic_0001>
module attributes {stable_mosaic.version = 11 : i64} {
  func.func @_navigator_kernel(%arg0: i32, %arg1: i32, %arg2: memref<1x9x4x9x8xf32, #tpu.memory_space<vmem>>, %arg3: memref<9x8x128xf32, #tpu.memory_space<vmem>>, %arg4: memref<1x128xf32, #tpu.memory_space<vmem>>, %arg5: memref<128x128xf32, #tpu.memory_space<vmem>>, %arg6: memref<1x128xf32, #tpu.memory_space<vmem>>, %arg7: memref<64x128xf32, #tpu.memory_space<vmem>>, %arg8: memref<64x128xf32, #tpu.memory_space<vmem>>) attributes {dimension_semantics = [#tpu.dimension_semantics<parallel>, #tpu.dimension_semantics<parallel>], iteration_bounds = array<i64: 2, 1>, scalar_prefetch = 0 : i64, scratch_operands = 0 : i64, tpu.core_type = #tpu.core_type<tc>, window_params = [{transform_indices = @transform_0, window_bounds = array<i64: 1, 9, 4, 9, 8>}, {pipeline_mode = #tpu.pipeline_mode<synchronous>, transform_indices = @transform_1, window_bounds = array<i64: 9, 8, 128>}, {pipeline_mode = #tpu.pipeline_mode<synchronous>, transform_indices = @transform_2, window_bounds = array<i64: 1, 128>}, {pipeline_mode = #tpu.pipeline_mode<synchronous>, transform_indices = @transform_3, window_bounds = array<i64: 128, 128>}, {pipeline_mode = #tpu.pipeline_mode<synchronous>, transform_indices = @transform_4, window_bounds = array<i64: 1, 128>}, {transform_indices = @transform_5, window_bounds = array<i64: 64, 128>}, {transform_indices = @transform_6, window_bounds = array<i64: 64, 128>}]} {
    %c0 = arith.constant 0 : index
    %c0_0 = arith.constant 0 : index
    %c0_1 = arith.constant 0 : index
    %c0_2 = arith.constant 0 : index
    %c0_3 = arith.constant 0 : index
    %0 = vector.load %arg2[%c0, %c0_0, %c0_1, %c0_2, %c0_3] : memref<1x9x4x9x8xf32, #tpu.memory_space<vmem>>, vector<1x8x1x8x8xf32>
    %1 = vector.shape_cast %0 : vector<1x8x1x8x8xf32> to vector<8x8x8xf32>
    %2 = vector.shape_cast %1 : vector<8x8x8xf32> to vector<64x8xf32>
    %c0_4 = arith.constant 0 : index
    %c0_5 = arith.constant 0 : index
    %c0_6 = arith.constant 0 : index
    %3 = vector.load %arg3[%c0_4, %c0_5, %c0_6] : memref<9x8x128xf32, #tpu.memory_space<vmem>>, vector<1x8x128xf32>
    %4 = vector.shape_cast %3 : vector<1x8x128xf32> to vector<8x128xf32>
    %cst = arith.constant dense<0.000000e+00> : vector<64x128xf32>
    %5 = tpu.matmul %2, %4, %cst {dimension_numbers = #tpu.dot_dimension_numbers<[1], [0], [0], [1], [0, 0, 1, 1], [], []>} : vector<64x8xf32>, vector<8x128xf32>, vector<64x128xf32> -> vector<64x128xf32>
    %c0_7 = arith.constant 0 : index
    %c0_8 = arith.constant 0 : index
    %c1 = arith.constant 1 : index
    %c0_9 = arith.constant 0 : index
    %c0_10 = arith.constant 0 : index
    %6 = vector.load %arg2[%c0_7, %c0_8, %c1, %c0_9, %c0_10] : memref<1x9x4x9x8xf32, #tpu.memory_space<vmem>>, vector<1x8x1x8x8xf32>
    %7 = vector.shape_cast %6 : vector<1x8x1x8x8xf32> to vector<8x8x8xf32>
    %8 = vector.shape_cast %7 : vector<8x8x8xf32> to vector<64x8xf32>
    %c1_11 = arith.constant 1 : index
    %c0_12 = arith.constant 0 : index
    %c0_13 = arith.constant 0 : index
    %9 = vector.load %arg3[%c1_11, %c0_12, %c0_13] : memref<9x8x128xf32, #tpu.memory_space<vmem>>, vector<1x8x128xf32>
    %10 = vector.shape_cast %9 : vector<1x8x128xf32> to vector<8x128xf32>
    %cst_14 = arith.constant dense<0.000000e+00> : vector<64x128xf32>
    %11 = tpu.matmul %8, %10, %cst_14 {dimension_numbers = #tpu.dot_dimension_numbers<[1], [0], [0], [1], [0, 0, 1, 1], [], []>} : vector<64x8xf32>, vector<8x128xf32>, vector<64x128xf32> -> vector<64x128xf32>
    %12 = arith.addf %5, %11 : vector<64x128xf32>
    %c0_15 = arith.constant 0 : index
    %c0_16 = arith.constant 0 : index
    %c0_17 = arith.constant 0 : index
    %c1_18 = arith.constant 1 : index
    %c0_19 = arith.constant 0 : index
    %13 = vector.load %arg2[%c0_15, %c0_16, %c0_17, %c1_18, %c0_19] : memref<1x9x4x9x8xf32, #tpu.memory_space<vmem>>, vector<1x8x1x8x8xf32>
    %14 = vector.shape_cast %13 : vector<1x8x1x8x8xf32> to vector<8x8x8xf32>
    %15 = vector.shape_cast %14 : vector<8x8x8xf32> to vector<64x8xf32>
    %c2 = arith.constant 2 : index
    %c0_20 = arith.constant 0 : index
    %c0_21 = arith.constant 0 : index
    %16 = vector.load %arg3[%c2, %c0_20, %c0_21] : memref<9x8x128xf32, #tpu.memory_space<vmem>>, vector<1x8x128xf32>
    %17 = vector.shape_cast %16 : vector<1x8x128xf32> to vector<8x128xf32>
    %cst_22 = arith.constant dense<0.000000e+00> : vector<64x128xf32>
    %18 = tpu.matmul %15, %17, %cst_22 {dimension_numbers = #tpu.dot_dimension_numbers<[1], [0], [0], [1], [0, 0, 1, 1], [], []>} : vector<64x8xf32>, vector<8x128xf32>, vector<64x128xf32> -> vector<64x128xf32>
    %19 = arith.addf %12, %18 : vector<64x128xf32>
    %c0_23 = arith.constant 0 : index
    %c0_24 = arith.constant 0 : index
    %c2_25 = arith.constant 2 : index
    %c0_26 = arith.constant 0 : index
    %c0_27 = arith.constant 0 : index
    %20 = vector.load %arg2[%c0_23, %c0_24, %c2_25, %c0_26, %c0_27] : memref<1x9x4x9x8xf32, #tpu.memory_space<vmem>>, vector<1x8x1x8x8xf32>
    %21 = vector.shape_cast %20 : vector<1x8x1x8x8xf32> to vector<8x8x8xf32>
    %22 = vector.shape_cast %21 : vector<8x8x8xf32> to vector<64x8xf32>
    %c3 = arith.constant 3 : index
    %c0_28 = arith.constant 0 : index
    %c0_29 = arith.constant 0 : index
    %23 = vector.load %arg3[%c3, %c0_28, %c0_29] : memref<9x8x128xf32, #tpu.memory_space<vmem>>, vector<1x8x128xf32>
    %24 = vector.shape_cast %23 : vector<1x8x128xf32> to vector<8x128xf32>
    %cst_30 = arith.constant dense<0.000000e+00> : vector<64x128xf32>
    %25 = tpu.matmul %22, %24, %cst_30 {dimension_numbers = #tpu.dot_dimension_numbers<[1], [0], [0], [1], [0, 0, 1, 1], [], []>} : vector<64x8xf32>, vector<8x128xf32>, vector<64x128xf32> -> vector<64x128xf32>
    %26 = arith.addf %19, %25 : vector<64x128xf32>
    %c0_31 = arith.constant 0 : index
    %c0_32 = arith.constant 0 : index
    %c3_33 = arith.constant 3 : index
    %c0_34 = arith.constant 0 : index
    %c0_35 = arith.constant 0 : index
    %27 = vector.load %arg2[%c0_31, %c0_32, %c3_33, %c0_34, %c0_35] : memref<1x9x4x9x8xf32, #tpu.memory_space<vmem>>, vector<1x8x1x8x8xf32>
    %28 = vector.shape_cast %27 : vector<1x8x1x8x8xf32> to vector<8x8x8xf32>
    %29 = vector.shape_cast %28 : vector<8x8x8xf32> to vector<64x8xf32>
    %c4 = arith.constant 4 : index
    %c0_36 = arith.constant 0 : index
    %c0_37 = arith.constant 0 : index
    %30 = vector.load %arg3[%c4, %c0_36, %c0_37] : memref<9x8x128xf32, #tpu.memory_space<vmem>>, vector<1x8x128xf32>
    %31 = vector.shape_cast %30 : vector<1x8x128xf32> to vector<8x128xf32>
    %cst_38 = arith.constant dense<0.000000e+00> : vector<64x128xf32>
    %32 = tpu.matmul %29, %31, %cst_38 {dimension_numbers = #tpu.dot_dimension_numbers<[1], [0], [0], [1], [0, 0, 1, 1], [], []>} : vector<64x8xf32>, vector<8x128xf32>, vector<64x128xf32> -> vector<64x128xf32>
    %33 = arith.addf %26, %32 : vector<64x128xf32>
    %c0_39 = arith.constant 0 : index
    %c0_40 = arith.constant 0 : index
    %c2_41 = arith.constant 2 : index
    %c1_42 = arith.constant 1 : index
    %c0_43 = arith.constant 0 : index
    %34 = vector.load %arg2[%c0_39, %c0_40, %c2_41, %c1_42, %c0_43] : memref<1x9x4x9x8xf32, #tpu.memory_space<vmem>>, vector<1x8x1x8x8xf32>
    %35 = vector.shape_cast %34 : vector<1x8x1x8x8xf32> to vector<8x8x8xf32>
    %36 = vector.shape_cast %35 : vector<8x8x8xf32> to vector<64x8xf32>
    %c5 = arith.constant 5 : index
    %c0_44 = arith.constant 0 : index
    %c0_45 = arith.constant 0 : index
    %37 = vector.load %arg3[%c5, %c0_44, %c0_45] : memref<9x8x128xf32, #tpu.memory_space<vmem>>, vector<1x8x128xf32>
    %38 = vector.shape_cast %37 : vector<1x8x128xf32> to vector<8x128xf32>
    %cst_46 = arith.constant dense<0.000000e+00> : vector<64x128xf32>
    %39 = tpu.matmul %36, %38, %cst_46 {dimension_numbers = #tpu.dot_dimension_numbers<[1], [0], [0], [1], [0, 0, 1, 1], [], []>} : vector<64x8xf32>, vector<8x128xf32>, vector<64x128xf32> -> vector<64x128xf32>
    %40 = arith.addf %33, %39 : vector<64x128xf32>
    %c0_47 = arith.constant 0 : index
    %c1_48 = arith.constant 1 : index
    %c0_49 = arith.constant 0 : index
    %c0_50 = arith.constant 0 : index
    %c0_51 = arith.constant 0 : index
    %41 = vector.load %arg2[%c0_47, %c1_48, %c0_49, %c0_50, %c0_51] : memref<1x9x4x9x8xf32, #tpu.memory_space<vmem>>, vector<1x8x1x8x8xf32>
    %42 = vector.shape_cast %41 : vector<1x8x1x8x8xf32> to vector<8x8x8xf32>
    %43 = vector.shape_cast %42 : vector<8x8x8xf32> to vector<64x8xf32>
    %c6 = arith.constant 6 : index
    %c0_52 = arith.constant 0 : index
    %c0_53 = arith.constant 0 : index
    %44 = vector.load %arg3[%c6, %c0_52, %c0_53] : memref<9x8x128xf32, #tpu.memory_space<vmem>>, vector<1x8x128xf32>
    %45 = vector.shape_cast %44 : vector<1x8x128xf32> to vector<8x128xf32>
    %cst_54 = arith.constant dense<0.000000e+00> : vector<64x128xf32>
    %46 = tpu.matmul %43, %45, %cst_54 {dimension_numbers = #tpu.dot_dimension_numbers<[1], [0], [0], [1], [0, 0, 1, 1], [], []>} : vector<64x8xf32>, vector<8x128xf32>, vector<64x128xf32> -> vector<64x128xf32>
    %47 = arith.addf %40, %46 : vector<64x128xf32>
    %c0_55 = arith.constant 0 : index
    %c1_56 = arith.constant 1 : index
    %c1_57 = arith.constant 1 : index
    %c0_58 = arith.constant 0 : index
    %c0_59 = arith.constant 0 : index
    %48 = vector.load %arg2[%c0_55, %c1_56, %c1_57, %c0_58, %c0_59] : memref<1x9x4x9x8xf32, #tpu.memory_space<vmem>>, vector<1x8x1x8x8xf32>
    %49 = vector.shape_cast %48 : vector<1x8x1x8x8xf32> to vector<8x8x8xf32>
    %50 = vector.shape_cast %49 : vector<8x8x8xf32> to vector<64x8xf32>
    %c7 = arith.constant 7 : index
    %c0_60 = arith.constant 0 : index
    %c0_61 = arith.constant 0 : index
    %51 = vector.load %arg3[%c7, %c0_60, %c0_61] : memref<9x8x128xf32, #tpu.memory_space<vmem>>, vector<1x8x128xf32>
    %52 = vector.shape_cast %51 : vector<1x8x128xf32> to vector<8x128xf32>
    %cst_62 = arith.constant dense<0.000000e+00> : vector<64x128xf32>
    %53 = tpu.matmul %50, %52, %cst_62 {dimension_numbers = #tpu.dot_dimension_numbers<[1], [0], [0], [1], [0, 0, 1, 1], [], []>} : vector<64x8xf32>, vector<8x128xf32>, vector<64x128xf32> -> vector<64x128xf32>
    %54 = arith.addf %47, %53 : vector<64x128xf32>
    %c0_63 = arith.constant 0 : index
    %c1_64 = arith.constant 1 : index
    %c0_65 = arith.constant 0 : index
    %c1_66 = arith.constant 1 : index
    %c0_67 = arith.constant 0 : index
    %55 = vector.load %arg2[%c0_63, %c1_64, %c0_65, %c1_66, %c0_67] : memref<1x9x4x9x8xf32, #tpu.memory_space<vmem>>, vector<1x8x1x8x8xf32>
    %56 = vector.shape_cast %55 : vector<1x8x1x8x8xf32> to vector<8x8x8xf32>
    %57 = vector.shape_cast %56 : vector<8x8x8xf32> to vector<64x8xf32>
    %c8 = arith.constant 8 : index
    %c0_68 = arith.constant 0 : index
    %c0_69 = arith.constant 0 : index
    %58 = vector.load %arg3[%c8, %c0_68, %c0_69] : memref<9x8x128xf32, #tpu.memory_space<vmem>>, vector<1x8x128xf32>
    %59 = vector.shape_cast %58 : vector<1x8x128xf32> to vector<8x128xf32>
    %cst_70 = arith.constant dense<0.000000e+00> : vector<64x128xf32>
    %60 = tpu.matmul %57, %59, %cst_70 {dimension_numbers = #tpu.dot_dimension_numbers<[1], [0], [0], [1], [0, 0, 1, 1], [], []>} : vector<64x8xf32>, vector<8x128xf32>, vector<64x128xf32> -> vector<64x128xf32>
    %61 = arith.addf %54, %60 : vector<64x128xf32>
    %c0_71 = arith.constant 0 : index
    %c0_72 = arith.constant 0 : index
    %62 = vector.load %arg4[%c0_71, %c0_72] : memref<1x128xf32, #tpu.memory_space<vmem>>, vector<1x128xf32>
    %63 = vector.broadcast %62 : vector<1x128xf32> to vector<64x128xf32>
    %64 = arith.addf %61, %63 : vector<64x128xf32>
    %cst_73 = arith.constant 0.000000e+00 : f32
    %65 = vector.broadcast %cst_73 : f32 to vector<64x128xf32>
    %66 = arith.maximumf %64, %65 : vector<64x128xf32>
    %c0_74 = arith.constant 0 : index
    %c0_75 = arith.constant 0 : index
    %67 = vector.load %arg7[%c0_74, %c0_75] : memref<64x128xf32, #tpu.memory_space<vmem>>, vector<64x128xf32>
    tpu.vector_store %arg7[%c0_74, %c0_75], %66 {strides = array<i32>} : memref<64x128xf32, #tpu.memory_space<vmem>>, vector<64x128xf32>,
    %c0_76 = arith.constant 0 : index
    %c0_77 = arith.constant 0 : index
    %68 = vector.load %arg7[%c0_76, %c0_77] : memref<64x128xf32, #tpu.memory_space<vmem>>, vector<64x128xf32>
    %c0_78 = arith.constant 0 : index
    %c0_79 = arith.constant 0 : index
    %69 = vector.load %arg5[%c0_78, %c0_79] : memref<128x128xf32, #tpu.memory_space<vmem>>, vector<128x128xf32>
    %cst_80 = arith.constant dense<0.000000e+00> : vector<64x128xf32>
    %70 = tpu.matmul %68, %69, %cst_80 {dimension_numbers = #tpu.dot_dimension_numbers<[1], [0], [0], [1], [0, 0, 1, 1], [], []>} : vector<64x128xf32>, vector<128x128xf32>, vector<64x128xf32> -> vector<64x128xf32>
    %c0_81 = arith.constant 0 : index
    %c0_82 = arith.constant 0 : index
    %71 = vector.load %arg6[%c0_81, %c0_82] : memref<1x128xf32, #tpu.memory_space<vmem>>, vector<1x128xf32>
    %72 = vector.broadcast %71 : vector<1x128xf32> to vector<64x128xf32>
    %73 = arith.addf %70, %72 : vector<64x128xf32>
    %c0_83 = arith.constant 0 : index
    %c0_84 = arith.constant 0 : index
    %74 = vector.load %arg8[%c0_83, %c0_84] : memref<64x128xf32, #tpu.memory_space<vmem>>, vector<64x128xf32>
    tpu.vector_store %arg8[%c0_83, %c0_84], %73 {strides = array<i32>} : memref<64x128xf32, #tpu.memory_space<vmem>>, vector<64x128xf32>,
    return
  }
  func.func @transform_0(%arg0: i32, %arg1: i32) -> (i32, i32, i32, i32, i32) {
    %c1_i32 = arith.constant 1 : i32
    %0 = arith.muli %arg0, %c1_i32 : i32
    %1 = arith.addi %0, %arg1 : i32
    %c0_i32 = arith.constant 0 : i32
    %c0_i32_0 = arith.constant 0 : i32
    %c0_i32_1 = arith.constant 0 : i32
    %c0_i32_2 = arith.constant 0 : i32
    %c0_i32_3 = arith.constant 0 : i32
    return %1, %c0_i32, %c0_i32_0, %c0_i32_1, %c0_i32_2 : i32, i32, i32, i32, i32
  }
  func.func @transform_1(%arg0: i32, %arg1: i32) -> (i32, i32, i32) {
    %c0_i32 = arith.constant 0 : i32
    %c0_i32_0 = arith.constant 0 : i32
    %c0_i32_1 = arith.constant 0 : i32
    %c0_i32_2 = arith.constant 0 : i32
    return %c0_i32, %c0_i32_0, %c0_i32_1 : i32, i32, i32
  }
  func.func @transform_2(%arg0: i32, %arg1: i32) -> (i32, i32) {
    %c0_i32 = arith.constant 0 : i32
    %c0_i32_0 = arith.constant 0 : i32
    %c0_i32_1 = arith.constant 0 : i32
    return %c0_i32, %c0_i32_0 : i32, i32
  }
  func.func @transform_3(%arg0: i32, %arg1: i32) -> (i32, i32) {
    %c0_i32 = arith.constant 0 : i32
    %c0_i32_0 = arith.constant 0 : i32
    %c0_i32_1 = arith.constant 0 : i32
    return %c0_i32, %c0_i32_0 : i32, i32
  }
  func.func @transform_4(%arg0: i32, %arg1: i32) -> (i32, i32) {
    %c0_i32 = arith.constant 0 : i32
    %c0_i32_0 = arith.constant 0 : i32
    %c0_i32_1 = arith.constant 0 : i32
    return %c0_i32, %c0_i32_0 : i32, i32
  }
  func.func @transform_5(%arg0: i32, %arg1: i32) -> (i32, i32) {
    %c1_i32 = arith.constant 1 : i32
    %0 = arith.muli %arg0, %c1_i32 : i32
    %1 = arith.addi %0, %arg1 : i32
    %c0_i32 = arith.constant 0 : i32
    %c0_i32_0 = arith.constant 0 : i32
    return %1, %c0_i32 : i32, i32
  }
  func.func @transform_6(%arg0: i32, %arg1: i32) -> (i32, i32) {
    %c1_i32 = arith.constant 1 : i32
    %0 = arith.muli %arg0, %c1_i32 : i32
    %1 = arith.addi %0, %arg1 : i32
    %c0_i32 = arith.constant 0 : i32
    %c0_i32_0 = arith.constant 0 : i32
    return %1, %c0_i32 : i32, i32
  }
}

</mosaic_0001>

<llo_original>
// kernel: navigator_branch_forward.1
$region0: #{navigator_branch_forward.1}
  #allocation0 [shape = 'u32[]', space=smem, size = 0x4, offset = 0x4, fixed_abs, tag = 'smem constant byte address 0x4 - core index']
  #allocation1 [shape = 'u32[72,128]{1,0:T(1,128)}', space=vmem, size = 0x9000, scoped, tag = 'internal scratch']
  %s0 = inlined_call_operand.vmem [shape: f32[2,9,4,9,8], index: 0, kind: input, shape index: {}]
  %s1 = inlined_call_operand.vmem [shape: f32[9,8,128], index: 1, kind: input, shape index: {}]
  %s2 = inlined_call_operand.vmem [shape: f32[1,128], index: 2, kind: input, shape index: {}]
  %s3 = inlined_call_operand.vmem [shape: f32[128,128], index: 3, kind: input, shape index: {}]
  %s4 = inlined_call_operand.vmem [shape: f32[1,128], index: 4, kind: input, shape index: {}]
  %s5 = inlined_call_operand.hbm [shape: f32[128,128], index: 5, kind: output, shape index: {0}]
  %s6 = inlined_call_operand.vmem [shape: f32[128,128], index: 6, kind: output, shape index: {1}]
  %7 = xla_tuple %s5, %s6
  %s8 = sld [smem:[#allocation0]]
  $region61: #{navigator_branch_forward.1} parent=0
    _
  %s10 = ssub.s32 1, %s8
  %s11 = scalar_select 0, %s10, %s8
  $region1: #{navigator_branch_forward.1} parent=0
    #allocation2 [shape = 'u8[65536]{0}', space=vmem, size = 0x10000, scoped, tag = 'output window, operand 0']
    #allocation3 [shape = 's32[2]{0}', space=sflag, size = 0x8, scoped, tag = 'scoped memory for navigator_branch_forward.1']
    %12 = vsyncpa [#allocation3], 0
    %s13 = scalar_lea.sflag [#allocation3], 1
    %14 = vsyncpa %s13, 0
    loop: start=0, step=1, limit=4
    $region2: #{navigator_branch_forward.1} parent=1 // loop_pre_header
      _
    $region3: #{navigator_branch_forward.1} parent=1 // loop_header
      %s16 = sphi 0, %s20
      %p17 = scmp.ge.s32.totalorder %s16, 4
      %s23 = sphi 0, %s35
      %s24 = sphi 0, %s31
      %s25 = sphi 0, %s23
      %s26 = sphi 0, %s24
      %s27 = sphi 0, %s25
      %s28 = sphi 0, %s26
      %s40 = sphi 0, %s42
      %s43 = sphi 0, %s40
      %s44 = sphi 0, %s43
      %s60 = sphi 0, %s44
      %s64 = sphi 0, %s64
      %s66 = sphi 0, %s64
      %s67 = sphi 0, %s66
      %s81 = sphi 0, %s67
      %s85 = sphi 0, %s85
      %s87 = sphi 0, %s85
      %s88 = sphi 0, %s87
      %s102 = sphi 0, %s88
      %s106 = sphi 0, %s106
      %s108 = sphi 0, %s106
      %s109 = sphi 0, %s108
      %s123 = sphi 0, %s109
      %s127 = sphi 0, %s127
      %s129 = sphi 0, %s127
      %s130 = sphi 0, %s129
      %s144 = sphi 0, %s130
      %s152 = sphi 0, %s154
      %s155 = sphi 0, %s152
      %s156 = sphi 0, %s155
      %s172 = sphi 0, %s156
      %s180 = sphi 0, %s182
      %s183 = sphi 0, %s180
      %s184 = sphi 0, %s183
      %s200 = sphi 0, %s184
    $region4: #{navigator_branch_forward.1} parent=1 // loop_header_branch
      %19 = sbr.rel (%p17) target = $region8
    $region5: #{navigator_branch_forward.1} parent=1 // loop_body
      %s21 = ssub.s32 %s16, 1
      %s22 = ssub.s32 %s16, 2
      %s29 = sadd.s32 1, %s24
      %p30 = scmp.ge.s32.totalorder %s29, 1
      %s31 = scalar_select %p30, 0, %s29
      %s32 = sadd.s32 1, %s23
      %s33 = scalar_select %p30, %s32, %s23
      %p34 = scmp.ge.s32.totalorder %s33, 2
      %s35 = scalar_select %p34, 0, %s33
      %s36 = sadd.s32 %s23, %s24
      %s37 = sadd.s32 %s35, %s31
      %s38 = ssub.s32 %s36, %s37
      %p39 = scmp.eq.s32.totalorder %s38, 0
      %s41 = sadd.s32 %s40, 1
      %s42 = scalar_select %p39, %s40, %s41
      %p45 = pneg %p39
      %p46 = scmp.eq.s32.totalorder %s16, 1
      %p47 = por %p45, %p46
      %p48 = scmp.ne.s32.totalorder %s40, %s43
      %p49 = scmp.eq.s32.totalorder %s16, 0
      %p50 = por %p48, %p49
      %p51 = scmp.ne.s32.totalorder %s40, %s43
      %p52 = scmp.eq.s32.totalorder %s21, 1
      %p53 = por %p51, %p52
      %p54 = scmp.ne.s32.totalorder %s43, %s44
      %p55 = scmp.eq.s32.totalorder %s21, 0
      %p56 = por %p54, %p55
      %p57 = scmp.ne.s32.totalorder %s43, %s44
      %p58 = scmp.eq.s32.totalorder %s22, 1
      %p59 = por %p57, %p58
      %p61 = scmp.ne.s32.totalorder %s44, %s60
      %p62 = scmp.eq.s32.totalorder %s22, 0
      %p63 = por %p61, %p62
      %s65 = sadd.s32 %s64, 1
      %p68 = scmp.eq.s32.totalorder %s16, 1
      %p69 = scmp.ne.s32.totalorder %s64, %s66
      %p70 = scmp.eq.s32.totalorder %s16, 0
      %p71 = por %p69, %p70
      %p72 = scmp.ne.s32.totalorder %s64, %s66
      %p73 = scmp.eq.s32.totalorder %s21, 1
      %p74 = por %p72, %p73
      %p75 = scmp.ne.s32.totalorder %s66, %s67
      %p76 = scmp.eq.s32.totalorder %s21, 0
      %p77 = por %p75, %p76
      %p78 = scmp.ne.s32.totalorder %s66, %s67
      %p79 = scmp.eq.s32.totalorder %s22, 1
      %p80 = por %p78, %p79
      %p82 = scmp.ne.s32.totalorder %s67, %s81
      %p83 = scmp.eq.s32.totalorder %s22, 0
      %p84 = por %p82, %p83
      %s86 = sadd.s32 %s85, 1
      %p89 = scmp.eq.s32.totalorder %s16, 1
      %p90 = scmp.ne.s32.totalorder %s85, %s87
      %p91 = scmp.eq.s32.totalorder %s16, 0
      %p92 = por %p90, %p91
      %p93 = scmp.ne.s32.totalorder %s85, %s87
      %p94 = scmp.eq.s32.totalorder %s21, 1
      %p95 = por %p93, %p94
      %p96 = scmp.ne.s32.totalorder %s87, %s88
      %p97 = scmp.eq.s32.totalorder %s21, 0
      %p98 = por %p96, %p97
      %p99 = scmp.ne.s32.totalorder %s87, %s88
      %p100 = scmp.eq.s32.totalorder %s22, 1
      %p101 = por %p99, %p100
      %p103 = scmp.ne.s32.totalorder %s88, %s102
      %p104 = scmp.eq.s32.totalorder %s22, 0
      %p105 = por %p103, %p104
      %s107 = sadd.s32 %s106, 1
      %p110 = scmp.eq.s32.totalorder %s16, 1
      %p111 = scmp.ne.s32.totalorder %s106, %s108
      %p112 = scmp.eq.s32.totalorder %s16, 0
      %p113 = por %p111, %p112
      %p114 = scmp.ne.s32.totalorder %s106, %s108
      %p115 = scmp.eq.s32.totalorder %s21, 1
      %p116 = por %p114, %p115
      %p117 = scmp.ne.s32.totalorder %s108, %s109
      %p118 = scmp.eq.s32.totalorder %s21, 0
      %p119 = por %p117, %p118
      %p120 = scmp.ne.s32.totalorder %s108, %s109
      %p121 = scmp.eq.s32.totalorder %s22, 1
      %p122 = por %p120, %p121
      %p124 = scmp.ne.s32.totalorder %s109, %s123
      %p125 = scmp.eq.s32.totalorder %s22, 0
      %p126 = por %p124, %p125
      %s128 = sadd.s32 %s127, 1
      %p131 = scmp.eq.s32.totalorder %s16, 1
      %p132 = scmp.ne.s32.totalorder %s127, %s129
      %p133 = scmp.eq.s32.totalorder %s16, 0
      %p134 = por %p132, %p133
      %p135 = scmp.ne.s32.totalorder %s127, %s129
      %p136 = scmp.eq.s32.totalorder %s21, 1
      %p137 = por %p135, %p136
      %p138 = scmp.ne.s32.totalorder %s129, %s130
      %p139 = scmp.eq.s32.totalorder %s21, 0
      %p140 = por %p138, %p139
      %p141 = scmp.ne.s32.totalorder %s129, %s130
      %p142 = scmp.eq.s32.totalorder %s22, 1
      %p143 = por %p141, %p142
      %p145 = scmp.ne.s32.totalorder %s130, %s144
      %p146 = scmp.eq.s32.totalorder %s22, 0
      %p147 = por %p145, %p146
      %s148 = sadd.s32 %s23, %s24
      %s149 = sadd.s32 %s35, %s31
      %s150 = ssub.s32 %s148, %s149
      %p151 = scmp.eq.s32.totalorder %s150, 0
      %s153 = sadd.s32 %s152, 1
      %s154 = scalar_select %p151, %s152, %s153
      %p157 = pneg %p151
      %p158 = scmp.eq.s32.totalorder %s16, 1
      %p159 = por %p157, %p158
      %p160 = scmp.ne.s32.totalorder %s152, %s155
      %p161 = scmp.eq.s32.totalorder %s16, 0
      %p162 = por %p160, %p161
      %p163 = scmp.ne.s32.totalorder %s152, %s155
      %p164 = scmp.eq.s32.totalorder %s21, 1
      %p165 = por %p163, %p164
      %p166 = scmp.ne.s32.totalorder %s155, %s156
      %p167 = scmp.eq.s32.totalorder %s21, 0
      %p168 = por %p166, %p167
      %p169 = scmp.ne.s32.totalorder %s155, %s156
      %p170 = scmp.eq.s32.totalorder %s22, 1
      %p171 = por %p169, %p170
      %p173 = scmp.ne.s32.totalorder %s156, %s172
      %p174 = scmp.eq.s32.totalorder %s22, 0
      %p175 = por %p173, %p174
      %s176 = sadd.s32 %s23, %s24
      %s177 = sadd.s32 %s35, %s31
      %s178 = ssub.s32 %s176, %s177
      %p179 = scmp.eq.s32.totalorder %s178, 0
      %s181 = sadd.s32 %s180, 1
      %s182 = scalar_select %p179, %s180, %s181
      %p185 = pneg %p179
      %p186 = scmp.eq.s32.totalorder %s16, 1
      %p187 = por %p185, %p186
      %p188 = scmp.ne.s32.totalorder %s180, %s183
      %p189 = scmp.eq.s32.totalorder %s16, 0
      %p190 = por %p188, %p189
      %p191 = scmp.ne.s32.totalorder %s180, %s183
      %p192 = scmp.eq.s32.totalorder %s21, 1
      %p193 = por %p191, %p192
      %p194 = scmp.ne.s32.totalorder %s183, %s184
      %p195 = scmp.eq.s32.totalorder %s21, 0
      %p196 = por %p194, %p195
      %p197 = scmp.ne.s32.totalorder %s183, %s184
      %p198 = scmp.eq.s32.totalorder %s22, 1
      %p199 = por %p197, %p198
      %p201 = scmp.ne.s32.totalorder %s184, %s200
      %p202 = scmp.eq.s32.totalorder %s22, 0
      %p203 = por %p201, %p202
      %p204 = scmp.le.s32.totalorder 1, %s16
      %p205 = scmp.lt.s32.totalorder %s16, 3
      %p206 = pnand %p204, %p205
      %p207 = pneg %p206
      // Predicated region
      $region9: #{navigator_branch_forward.1} parent=5 // pred_check
        _
      $region10: #{navigator_branch_forward.1} parent=5 // pred_check_branch
        %209 = sbr.rel (%p206) target = $region12
      $region11: #{navigator_branch_forward.1} parent=5 // pred_region
        %s210 = ssub.s32 %s16, 1
        // Predicated region
        $region13: #{navigator_branch_forward.1} parent=11 // pred_check
          %p211 = pneg %p77
        $region14: #{navigator_branch_forward.1} parent=11 // pred_check_branch
          %213 = sbr.rel (%p211) target = $region16
        $region15: #{navigator_branch_forward.1} parent=11 // pred_region
          _
        $region16: #{navigator_branch_forward.1} parent=11 // pred_fallthru
          _
        // Predicated region
        $region17: #{navigator_branch_forward.1} parent=11 // pred_check
          %p214 = pneg %p98
        $region18: #{navigator_branch_forward.1} parent=11 // pred_check_branch
          %216 = sbr.rel (%p214) target = $region20
        $region19: #{navigator_branch_forward.1} parent=11 // pred_region
          _
        $region20: #{navigator_branch_forward.1} parent=11 // pred_fallthru
          _
        // Predicated region
        $region21: #{navigator_branch_forward.1} parent=11 // pred_check
          %p217 = pneg %p119
        $region22: #{navigator_branch_forward.1} parent=11 // pred_check_branch
          %219 = sbr.rel (%p217) target = $region24
        $region23: #{navigator_branch_forward.1} parent=11 // pred_region
          _
        $region24: #{navigator_branch_forward.1} parent=11 // pred_fallthru
          _
        // Predicated region
        $region25: #{navigator_branch_forward.1} parent=11 // pred_check
          %p220 = pneg %p140
        $region26: #{navigator_branch_forward.1} parent=11 // pred_check_branch
          %222 = sbr.rel (%p220) target = $region28
        $region27: #{navigator_branch_forward.1} parent=11 // pred_region
          _
        $region28: #{navigator_branch_forward.1} parent=11 // pred_fallthru
          _
      $region12: #{navigator_branch_forward.1} parent=5 // pred_fallthru
        _
      %p223 = scmp.lt.s32.totalorder %s16, 2
      // Predicated region
      $region29: #{navigator_branch_forward.1} parent=5 // pred_check
        %p224 = pneg %p223
      $region30: #{navigator_branch_forward.1} parent=5 // pred_check_branch
        %226 = sbr.rel (%p224) target = $region32
      $region31: #{navigator_branch_forward.1} parent=5 // pred_region
        // Predicated region
        $region33: #{navigator_branch_forward.1} parent=31 // pred_check
          %p227 = pneg %p50
        $region34: #{navigator_branch_forward.1} parent=31 // pred_check_branch
          %229 = sbr.rel (%p227) target = $region36
        $region35: #{navigator_branch_forward.1} parent=31 // pred_region
          %s230 = sadd.s32 %s23, %s24
          %p231 = scmp.lt.s32.totalorder %s230, 1
          %s232 = scalar_select %p231, %s230, 1
          %s233 = smul.addr %s232, 72
          %s234 = smul.addr %s233, 8
          %s235 = scalar_lea.vmem %s0, %s234
          %s236 = sadd.s32 %s23, %s24
        $region36: #{navigator_branch_forward.1} parent=31 // pred_fallthru
          _
      $region32: #{navigator_branch_forward.1} parent=5 // pred_fallthru
        _
      %p237 = scmp.le.s32.totalorder 1, %s16
      %p238 = scmp.lt.s32.totalorder %s16, 3
      %p239 = pnand %p237, %p238
      %p240 = pneg %p239
      // Predicated region
      $region37: #{navigator_branch_forward.1} parent=5 // pred_check
        _
      $region38: #{navigator_branch_forward.1} parent=5 // pred_check_branch
        %242 = sbr.rel (%p239) target = $region40
      $region39: #{navigator_branch_forward.1} parent=5 // pred_region
        %s243 = ssub.s32 %s16, 1
        %s244 = sadd.s32 %s25, %s26
        %p245 = scmp.lt.s32.totalorder %s244, 1
        %s246 = scalar_select %p245, %s244, 1
        %s247 = smul.addr %s246, 72
        %s248 = smul.addr %s247, 8
        %s249 = scalar_lea.vmem %s0, %s248
        %p250 = pneg %p56
        %p251 = pneg %p53
        %p252 = pneg %p77
        %p253 = pneg %p74
        %p254 = pneg %p98
        %p255 = pneg %p95
        %p256 = pneg %p119
        %p257 = pneg %p116
        %p258 = pneg %p140
        %p259 = pneg %p137
        %p260 = pneg %p168
        %p261 = pneg %p165
        %s262 = sand.u32 %s155, 1
        %s263 = scalar_lea.sflag [#allocation3], %s262
        %s264 = sand.u32 %s155, 1
        %s265 = smul.addr %s264, 64
        %s266 = scalar_lea.vmem [#allocation2], %s265
        %p267 = pneg %p196
        %p268 = pneg %p193
        %s269 = sadd.s32 %s25, %s26
        %s270 = smul.u32 8, %s269
        %p271 = scmp.lt.s32.totalorder %s270, 15
        %s272 = scalar_select %p271, %s270, 15
        %s273 = smul.addr %s272, 8
        %s274 = scalar_lea.vmem %s6, %s273
        %s275 = sadd.s32 %s25, %s26
        %p276 = scmp.lt.s32.totalorder %s275, 1
        %s277 = scalar_select %p276, %s275, 1
        %s278 = smul.addr %s277, 72
        %s279 = smul.addr %s278, 8
        %s280 = scalar_lea.vmem %s0, %s279
        %s281 = sadd.s32 %s25, %s26
        %s282 = sadd.s32 %s25, %s26
        %s283 = smul.u32 8, %s282
        %s284 = sadd.s32 %s25, %s26
        %s285 = smul.u32 8, %s284
        %p286 = scmp.lt.s32.totalorder %s285, 15
        %s287 = scalar_select %p286, %s285, 15
        %s288 = smul.addr %s287, 8
        %s289 = scalar_lea.vmem %s6, %s288
        %s290 = sadd.s32 %s25, %s26
        %s291 = smul.u32 8, %s290
        %v292 = vld [vmem:[%s280] sm:$0xff]
        %v293 = vld [vmem:[%s280 + $0x40] sm:$0xff]
        %v294 = vld [vmem:[%s280 + $0x80] sm:$0xff]
        %v295 = vld [vmem:[%s280 + $0xc0] sm:$0xff]
        %v296 = vld [vmem:[%s280 + $0x100] sm:$0xff]
        %v297 = vld [vmem:[%s280 + $0x140] sm:$0xff]
        %v298 = vld [vmem:[%s280 + $0x180] sm:$0xff]
        %v299 = vld [vmem:[%s280 + $0x1c0] sm:$0xff]
        %v300 = vld [vmem:[%s1] sm:$0xff]
        %s301 = scalar_lea.vmem %s280, 16
        %v302 = vld [vmem:[%s301] sm:$0xff]
        %v303 = vld [vmem:[%s301 + $0x40] sm:$0xff]
        %v304 = vld [vmem:[%s301 + $0x80] sm:$0xff]
        %v305 = vld [vmem:[%s301 + $0xc0] sm:$0xff]
        %v306 = vld [vmem:[%s301 + $0x100] sm:$0xff]
        %v307 = vld [vmem:[%s301 + $0x140] sm:$0xff]
        %v308 = vld [vmem:[%s301 + $0x180] sm:$0xff]
        %v309 = vld [vmem:[%s301 + $0x1c0] sm:$0xff]
        %s310 = scalar_lea.vmem %s1, 8
        %v311 = vld [vmem:[%s310] sm:$0xff]
        %vm312 = vcmask 64512
        %v314 = vsel %vm312, %v302, 0
        %v317 = vsel %vm312, %v303, 0
        %v320 = vsel %vm312, %v304, 0
        %v323 = vsel %vm312, %v305, 0
        %v326 = vsel %vm312, %v306, 0
        %v329 = vsel %vm312, %v307, 0
        %v332 = vsel %vm312, %v308, 0
        %v335 = vsel %vm312, %v309, 0
        %337 = vmatpush.msra.mxu0 0.0
        %338 = vmatpush.msra.mxu0 0.0
        %339 = vmatpush.msra.mxu0 0.0
        %340 = vmatpush.msra.mxu0 0.0
        %341 = vmatpush.msra.mxu0 0.0
        %342 = vmatpush.msra.mxu0 0.0
        %343 = vmatpush.msra.mxu0 0.0
        %344 = vmatpush.msra.mxu0 0.0
        %345 = vmatpush.msra.mxu0 0.0
        %346 = vmatpush.msra.mxu0 0.0
        %347 = vmatpush.msra.mxu0 0.0
        %348 = vmatpush.msra.mxu0 0.0
        %349 = vmatpush.msra.mxu0 0.0
        %350 = vmatpush.msra.mxu0 0.0
        %351 = vmatpush.msra.mxu0 0.0
        %352 = vmatpush.msra.mxu0 %v311
        %353 = vmatmul.f32.gmra.mxu0 %v314
        %v354 = vpop.f32.mrf.mxu0
        %v355 = vadd.f32 0.0, %v354
        %356 = vmatmul.f32.gmra.mxu0 %v317
        %v357 = vpop.f32.mrf.mxu0
        %v358 = vadd.f32 0.0, %v357
        %359 = vmatmul.f32.gmra.mxu0 %v320
        %v360 = vpop.f32.mrf.mxu0
        %v361 = vadd.f32 0.0, %v360
        %362 = vmatmul.f32.gmra.mxu0 %v323
        %v363 = vpop.f32.mrf.mxu0
        %v364 = vadd.f32 0.0, %v363
        %365 = vmatmul.f32.gmra.mxu0 %v326
        %v366 = vpop.f32.mrf.mxu0
        %v367 = vadd.f32 0.0, %v366
        %368 = vmatmul.f32.gmra.mxu0 %v329
        %v369 = vpop.f32.mrf.mxu0
        %v370 = vadd.f32 0.0, %v369
        %371 = vmatmul.f32.gmra.mxu0 %v332
        %v372 = vpop.f32.mrf.mxu0
        %v373 = vadd.f32 0.0, %v372
        %374 = vmatmul.f32.gmra.mxu0 %v335
        %v375 = vpop.f32.mrf.mxu0
        %v376 = vadd.f32 0.0, %v375
        %377 = vdwg.mxu0
        %v379 = vsel %vm312, %v292, 0
        %v382 = vsel %vm312, %v293, 0
        %v385 = vsel %vm312, %v294, 0
        %v388 = vsel %vm312, %v295, 0
        %v391 = vsel %vm312, %v296, 0
        %v394 = vsel %vm312, %v297, 0
        %v397 = vsel %vm312, %v298, 0
        %v400 = vsel %vm312, %v299, 0
        %402 = vmatpush.msra.mxu0 0.0
        %403 = vmatpush.msra.mxu0 0.0
        %404 = vmatpush.msra.mxu0 0.0
        %405 = vmatpush.msra.mxu0 0.0
        %406 = vmatpush.msra.mxu0 0.0
        %407 = vmatpush.msra.mxu0 0.0
        %408 = vmatpush.msra.mxu0 0.0
        %409 = vmatpush.msra.mxu0 0.0
        %410 = vmatpush.msra.mxu0 0.0
        %411 = vmatpush.msra.mxu0 0.0
        %412 = vmatpush.msra.mxu0 0.0
        %413 = vmatpush.msra.mxu0 0.0
        %414 = vmatpush.msra.mxu0 0.0
        %415 = vmatpush.msra.mxu0 0.0
        %416 = vmatpush.msra.mxu0 0.0
        %417 = vmatpush.msra.mxu0 %v300
        %418 = vmatmul.f32.gmra.mxu0 %v379
        %v419 = vpop.f32.mrf.mxu0
        %v420 = vadd.f32 %v355, %v419
        %421 = vmatmul.f32.gmra.mxu0 %v382
        %v422 = vpop.f32.mrf.mxu0
        %v423 = vadd.f32 %v358, %v422
        %424 = vmatmul.f32.gmra.mxu0 %v385
        %v425 = vpop.f32.mrf.mxu0
        %v426 = vadd.f32 %v361, %v425
        %427 = vmatmul.f32.gmra.mxu0 %v388
        %v428 = vpop.f32.mrf.mxu0
        %v429 = vadd.f32 %v364, %v428
        %430 = vmatmul.f32.gmra.mxu0 %v391
        %v431 = vpop.f32.mrf.mxu0
        %v432 = vadd.f32 %v367, %v431
        %433 = vmatmul.f32.gmra.mxu0 %v394
        %v434 = vpop.f32.mrf.mxu0
        %v435 = vadd.f32 %v370, %v434
        %436 = vmatmul.f32.gmra.mxu0 %v397
        %v437 = vpop.f32.mrf.mxu0
        %v438 = vadd.f32 %v373, %v437
        %439 = vmatmul.f32.gmra.mxu0 %v400
        %v440 = vpop.f32.mrf.mxu0
        %v441 = vadd.f32 %v376, %v440
        %442 = vdwg.mxu0
        %v443 = vld [vmem:[%s280 + $0x1] sm:$0xff]
        %v444 = vld [vmem:[%s280 + $0x41] sm:$0xff]
        %v445 = vld [vmem:[%s280 + $0x81] sm:$0xff]
        %v446 = vld [vmem:[%s280 + $0xc1] sm:$0xff]
        %v447 = vld [vmem:[%s280 + $0x101] sm:$0xff]
        %v448 = vld [vmem:[%s280 + $0x141] sm:$0xff]
        %v449 = vld [vmem:[%s280 + $0x181] sm:$0xff]
        %v450 = vld [vmem:[%s280 + $0x1c1] sm:$0xff]
        %s451 = scalar_lea.vmem %s1, 16
        %v452 = vld [vmem:[%s451] sm:$0xff]
        %v454 = vsel %vm312, %v443, 0
        %v457 = vsel %vm312, %v444, 0
        %v460 = vsel %vm312, %v445, 0
        %v463 = vsel %vm312, %v446, 0
        %v466 = vsel %vm312, %v447, 0
        %v469 = vsel %vm312, %v448, 0
        %v472 = vsel %vm312, %v449, 0
        %v475 = vsel %vm312, %v450, 0
        %477 = vmatpush.msra.mxu0 0.0
        %478 = vmatpush.msra.mxu0 0.0
        %479 = vmatpush.msra.mxu0 0.0
        %480 = vmatpush.msra.mxu0 0.0
        %481 = vmatpush.msra.mxu0 0.0
        %482 = vmatpush.msra.mxu0 0.0
        %483 = vmatpush.msra.mxu0 0.0
        %484 = vmatpush.msra.mxu0 0.0
        %485 = vmatpush.msra.mxu0 0.0
        %486 = vmatpush.msra.mxu0 0.0
        %487 = vmatpush.msra.mxu0 0.0
        %488 = vmatpush.msra.mxu0 0.0
        %489 = vmatpush.msra.mxu0 0.0
        %490 = vmatpush.msra.mxu0 0.0
        %491 = vmatpush.msra.mxu0 0.0
        %492 = vmatpush.msra.mxu0 %v452
        %493 = vmatmul.f32.gmra.mxu0 %v454
        %v494 = vpop.f32.mrf.mxu0
        %v495 = vadd.f32 0.0, %v494
        %496 = vmatmul.f32.gmra.mxu0 %v457
        %v497 = vpop.f32.mrf.mxu0
        %v498 = vadd.f32 0.0, %v497
        %499 = vmatmul.f32.gmra.mxu0 %v460
        %v500 = vpop.f32.mrf.mxu0
        %v501 = vadd.f32 0.0, %v500
        %502 = vmatmul.f32.gmra.mxu0 %v463
        %v503 = vpop.f32.mrf.mxu0
        %v504 = vadd.f32 0.0, %v503
        %505 = vmatmul.f32.gmra.mxu0 %v466
        %v506 = vpop.f32.mrf.mxu0
        %v507 = vadd.f32 0.0, %v506
        %508 = vmatmul.f32.gmra.mxu0 %v469
        %v509 = vpop.f32.mrf.mxu0
        %v510 = vadd.f32 0.0, %v509
        %511 = vmatmul.f32.gmra.mxu0 %v472
        %v512 = vpop.f32.mrf.mxu0
        %v513 = vadd.f32 0.0, %v512
        %514 = vmatmul.f32.gmra.mxu0 %v475
        %v515 = vpop.f32.mrf.mxu0
        %v516 = vadd.f32 0.0, %v515
        %517 = vdwg.mxu0
        %v518 = vadd.f32 %v420, %v495
        %v519 = vadd.f32 %v423, %v498
        %v520 = vadd.f32 %v426, %v501
        %v521 = vadd.f32 %v429, %v504
        %v522 = vadd.f32 %v432, %v507
        %v523 = vadd.f32 %v435, %v510
        %v524 = vadd.f32 %v438, %v513
        %v525 = vadd.f32 %v441, %v516
        %s526 = scalar_lea.vmem %s280, 32
        %v527 = vld [vmem:[%s526] sm:$0xff]
        %v528 = vld [vmem:[%s526 + $0x40] sm:$0xff]
        %v529 = vld [vmem:[%s526 + $0x80] sm:$0xff]
        %v530 = vld [vmem:[%s526 + $0xc0] sm:$0xff]
        %v531 = vld [vmem:[%s526 + $0x100] sm:$0xff]
        %v532 = vld [vmem:[%s526 + $0x140] sm:$0xff]
        %v533 = vld [vmem:[%s526 + $0x180] sm:$0xff]
        %v534 = vld [vmem:[%s526 + $0x1c0] sm:$0xff]
        %s535 = scalar_lea.vmem %s1, 24
        %v536 = vld [vmem:[%s535] sm:$0xff]
        %v538 = vsel %vm312, %v527, 0
        %v541 = vsel %vm312, %v528, 0
        %v544 = vsel %vm312, %v529, 0
        %v547 = vsel %vm312, %v530, 0
        %v550 = vsel %vm312, %v531, 0
        %v553 = vsel %vm312, %v532, 0
        %v556 = vsel %vm312, %v533, 0
        %v559 = vsel %vm312, %v534, 0
        %561 = vmatpush.msra.mxu0 0.0
        %562 = vmatpush.msra.mxu0 0.0
        %563 = vmatpush.msra.mxu0 0.0
        %564 = vmatpush.msra.mxu0 0.0
        %565 = vmatpush.msra.mxu0 0.0
        %566 = vmatpush.msra.mxu0 0.0
        %567 = vmatpush.msra.mxu0 0.0
        %568 = vmatpush.msra.mxu0 0.0
        %569 = vmatpush.msra.mxu0 0.0
        %570 = vmatpush.msra.mxu0 0.0
        %571 = vmatpush.msra.mxu0 0.0
        %572 = vmatpush.msra.mxu0 0.0
        %573 = vmatpush.msra.mxu0 0.0
        %574 = vmatpush.msra.mxu0 0.0
        %575 = vmatpush.msra.mxu0 0.0
        %576 = vmatpush.msra.mxu0 %v536
        %577 = vmatmul.f32.gmra.mxu0 %v538
        %v578 = vpop.f32.mrf.mxu0
        %v579 = vadd.f32 0.0, %v578
        %580 = vmatmul.f32.gmra.mxu0 %v541
        %v581 = vpop.f32.mrf.mxu0
        %v582 = vadd.f32 0.0, %v581
        %583 = vmatmul.f32.gmra.mxu0 %v544
        %v584 = vpop.f32.mrf.mxu0
        %v585 = vadd.f32 0.0, %v584
        %586 = vmatmul.f32.gmra.mxu0 %v547
        %v587 = vpop.f32.mrf.mxu0
        %v588 = vadd.f32 0.0, %v587
        %589 = vmatmul.f32.gmra.mxu0 %v550
        %v590 = vpop.f32.mrf.mxu0
        %v591 = vadd.f32 0.0, %v590
        %592 = vmatmul.f32.gmra.mxu0 %v553
        %v593 = vpop.f32.mrf.mxu0
        %v594 = vadd.f32 0.0, %v593
        %595 = vmatmul.f32.gmra.mxu0 %v556
        %v596 = vpop.f32.mrf.mxu0
        %v597 = vadd.f32 0.0, %v596
        %598 = vmatmul.f32.gmra.mxu0 %v559
        %v599 = vpop.f32.mrf.mxu0
        %v600 = vadd.f32 0.0, %v599
        %601 = vdwg.mxu0
        %v602 = vadd.f32 %v518, %v579
        %v603 = vadd.f32 %v519, %v582
        %v604 = vadd.f32 %v520, %v585
        %v605 = vadd.f32 %v521, %v588
        %v606 = vadd.f32 %v522, %v591
        %v607 = vadd.f32 %v523, %v594
        %v608 = vadd.f32 %v524, %v597
        %v609 = vadd.f32 %v525, %v600
        %s610 = scalar_lea.vmem %s280, 48
        %v611 = vld [vmem:[%s610] sm:$0xff]
        %v612 = vld [vmem:[%s610 + $0x40] sm:$0xff]
        %v613 = vld [vmem:[%s610 + $0x80] sm:$0xff]
        %v614 = vld [vmem:[%s610 + $0xc0] sm:$0xff]
        %v615 = vld [vmem:[%s610 + $0x100] sm:$0xff]
        %v616 = vld [vmem:[%s610 + $0x140] sm:$0xff]
        %v617 = vld [vmem:[%s610 + $0x180] sm:$0xff]
        %v618 = vld [vmem:[%s610 + $0x1c0] sm:$0xff]
        %s619 = scalar_lea.vmem %s1, 32
        %v620 = vld [vmem:[%s619] sm:$0xff]
        %v622 = vsel %vm312, %v611, 0
        %v625 = vsel %vm312, %v612, 0
        %v628 = vsel %vm312, %v613, 0
        %v631 = vsel %vm312, %v614, 0
        %v634 = vsel %vm312, %v615, 0
        %v637 = vsel %vm312, %v616, 0
        %v640 = vsel %vm312, %v617, 0
        %v643 = vsel %vm312, %v618, 0
        %645 = vmatpush.msra.mxu0 0.0
        %646 = vmatpush.msra.mxu0 0.0
        %647 = vmatpush.msra.mxu0 0.0
        %648 = vmatpush.msra.mxu0 0.0
        %649 = vmatpush.msra.mxu0 0.0
        %650 = vmatpush.msra.mxu0 0.0
        %651 = vmatpush.msra.mxu0 0.0
        %652 = vmatpush.msra.mxu0 0.0
        %653 = vmatpush.msra.mxu0 0.0
        %654 = vmatpush.msra.mxu0 0.0
        %655 = vmatpush.msra.mxu0 0.0
        %656 = vmatpush.msra.mxu0 0.0
        %657 = vmatpush.msra.mxu0 0.0
        %658 = vmatpush.msra.mxu0 0.0
        %659 = vmatpush.msra.mxu0 0.0
        %660 = vmatpush.msra.mxu0 %v620
        %661 = vmatmul.f32.gmra.mxu0 %v622
        %v662 = vpop.f32.mrf.mxu0
        %v663 = vadd.f32 0.0, %v662
        %664 = vmatmul.f32.gmra.mxu0 %v625
        %v665 = vpop.f32.mrf.mxu0
        %v666 = vadd.f32 0.0, %v665
        %667 = vmatmul.f32.gmra.mxu0 %v628
        %v668 = vpop.f32.mrf.mxu0
        %v669 = vadd.f32 0.0, %v668
        %670 = vmatmul.f32.gmra.mxu0 %v631
        %v671 = vpop.f32.mrf.mxu0
        %v672 = vadd.f32 0.0, %v671
        %673 = vmatmul.f32.gmra.mxu0 %v634
        %v674 = vpop.f32.mrf.mxu0
        %v675 = vadd.f32 0.0, %v674
        %676 = vmatmul.f32.gmra.mxu0 %v637
        %v677 = vpop.f32.mrf.mxu0
        %v678 = vadd.f32 0.0, %v677
        %679 = vmatmul.f32.gmra.mxu0 %v640
        %v680 = vpop.f32.mrf.mxu0
        %v681 = vadd.f32 0.0, %v680
        %682 = vmatmul.f32.gmra.mxu0 %v643
        %v683 = vpop.f32.mrf.mxu0
        %v684 = vadd.f32 0.0, %v683
        %685 = vdwg.mxu0
        %v686 = vadd.f32 %v602, %v663
        %v687 = vadd.f32 %v603, %v666
        %v688 = vadd.f32 %v604, %v669
        %v689 = vadd.f32 %v605, %v672
        %v690 = vadd.f32 %v606, %v675
        %v691 = vadd.f32 %v607, %v678
        %v692 = vadd.f32 %v608, %v681
        %v693 = vadd.f32 %v609, %v684
        %v694 = vld [vmem:[%s526 + $0x1] sm:$0xff]
        %v695 = vld [vmem:[%s526 + $0x41] sm:$0xff]
        %v696 = vld [vmem:[%s526 + $0x81] sm:$0xff]
        %v697 = vld [vmem:[%s526 + $0xc1] sm:$0xff]
        %v698 = vld [vmem:[%s526 + $0x101] sm:$0xff]
        %v699 = vld [vmem:[%s526 + $0x141] sm:$0xff]
        %v700 = vld [vmem:[%s526 + $0x181] sm:$0xff]
        %v701 = vld [vmem:[%s526 + $0x1c1] sm:$0xff]
        %s702 = scalar_lea.vmem %s1, 40
        %v703 = vld [vmem:[%s702] sm:$0xff]
        %v705 = vsel %vm312, %v694, 0
        %v708 = vsel %vm312, %v695, 0
        %v711 = vsel %vm312, %v696, 0
        %v714 = vsel %vm312, %v697, 0
        %v717 = vsel %vm312, %v698, 0
        %v720 = vsel %vm312, %v699, 0
        %v723 = vsel %vm312, %v700, 0
        %v726 = vsel %vm312, %v701, 0
        %728 = vmatpush.msra.mxu0 0.0
        %729 = vmatpush.msra.mxu0 0.0
        %730 = vmatpush.msra.mxu0 0.0
        %731 = vmatpush.msra.mxu0 0.0
        %732 = vmatpush.msra.mxu0 0.0
        %733 = vmatpush.msra.mxu0 0.0
        %734 = vmatpush.msra.mxu0 0.0
        %735 = vmatpush.msra.mxu0 0.0
        %736 = vmatpush.msra.mxu0 0.0
        %737 = vmatpush.msra.mxu0 0.0
        %738 = vmatpush.msra.mxu0 0.0
        %739 = vmatpush.msra.mxu0 0.0
        %740 = vmatpush.msra.mxu0 0.0
        %741 = vmatpush.msra.mxu0 0.0
        %742 = vmatpush.msra.mxu0 0.0
        %743 = vmatpush.msra.mxu0 %v703
        %744 = vmatmul.f32.gmra.mxu0 %v705
        %v745 = vpop.f32.mrf.mxu0
        %v746 = vadd.f32 0.0, %v745
        %747 = vmatmul.f32.gmra.mxu0 %v708
        %v748 = vpop.f32.mrf.mxu0
        %v749 = vadd.f32 0.0, %v748
        %750 = vmatmul.f32.gmra.mxu0 %v711
        %v751 = vpop.f32.mrf.mxu0
        %v752 = vadd.f32 0.0, %v751
        %753 = vmatmul.f32.gmra.mxu0 %v714
        %v754 = vpop.f32.mrf.mxu0
        %v755 = vadd.f32 0.0, %v754
        %756 = vmatmul.f32.gmra.mxu0 %v717
        %v757 = vpop.f32.mrf.mxu0
        %v758 = vadd.f32 0.0, %v757
        %759 = vmatmul.f32.gmra.mxu0 %v720
        %v760 = vpop.f32.mrf.mxu0
        %v761 = vadd.f32 0.0, %v760
        %762 = vmatmul.f32.gmra.mxu0 %v723
        %v763 = vpop.f32.mrf.mxu0
        %v764 = vadd.f32 0.0, %v763
        %765 = vmatmul.f32.gmra.mxu0 %v726
        %v766 = vpop.f32.mrf.mxu0
        %v767 = vadd.f32 0.0, %v766
        %768 = vdwg.mxu0
        %v769 = vadd.f32 %v686, %v746
        %v770 = vadd.f32 %v687, %v749
        %v771 = vadd.f32 %v688, %v752
        %v772 = vadd.f32 %v689, %v755
        %v773 = vadd.f32 %v690, %v758
        %v774 = vadd.f32 %v691, %v761
        %v775 = vadd.f32 %v692, %v764
        %v776 = vadd.f32 %v693, %v767
        %s777 = scalar_lea.vmem %s280, 64
        %v778 = vld [vmem:[%s777] sm:$0xff]
        %v779 = vld [vmem:[%s777 + $0x40] sm:$0xff]
        %v780 = vld [vmem:[%s777 + $0x80] sm:$0xff]
        %v781 = vld [vmem:[%s777 + $0xc0] sm:$0xff]
        %v782 = vld [vmem:[%s777 + $0x100] sm:$0xff]
        %v783 = vld [vmem:[%s777 + $0x140] sm:$0xff]
        %v784 = vld [vmem:[%s777 + $0x180] sm:$0xff]
        %v785 = vld [vmem:[%s777 + $0x1c0] sm:$0xff]
        %s786 = scalar_lea.vmem %s1, 48
        %v787 = vld [vmem:[%s786] sm:$0xff]
        %v789 = vsel %vm312, %v778, 0
        %v792 = vsel %vm312, %v779, 0
        %v795 = vsel %vm312, %v780, 0
        %v798 = vsel %vm312, %v781, 0
        %v801 = vsel %vm312, %v782, 0
        %v804 = vsel %vm312, %v783, 0
        %v807 = vsel %vm312, %v784, 0
        %v810 = vsel %vm312, %v785, 0
        %812 = vmatpush.msra.mxu0 0.0
        %813 = vmatpush.msra.mxu0 0.0
        %814 = vmatpush.msra.mxu0 0.0
        %815 = vmatpush.msra.mxu0 0.0
        %816 = vmatpush.msra.mxu0 0.0
        %817 = vmatpush.msra.mxu0 0.0
        %818 = vmatpush.msra.mxu0 0.0
        %819 = vmatpush.msra.mxu0 0.0
        %820 = vmatpush.msra.mxu0 0.0
        %821 = vmatpush.msra.mxu0 0.0
        %822 = vmatpush.msra.mxu0 0.0
        %823 = vmatpush.msra.mxu0 0.0
        %824 = vmatpush.msra.mxu0 0.0
        %825 = vmatpush.msra.mxu0 0.0
        %826 = vmatpush.msra.mxu0 0.0
        %827 = vmatpush.msra.mxu0 %v787
        %828 = vmatmul.f32.gmra.mxu0 %v789
        %v829 = vpop.f32.mrf.mxu0
        %v830 = vadd.f32 0.0, %v829
        %831 = vmatmul.f32.gmra.mxu0 %v792
        %v832 = vpop.f32.mrf.mxu0
        %v833 = vadd.f32 0.0, %v832
        %834 = vmatmul.f32.gmra.mxu0 %v795
        %v835 = vpop.f32.mrf.mxu0
        %v836 = vadd.f32 0.0, %v835
        %837 = vmatmul.f32.gmra.mxu0 %v798
        %v838 = vpop.f32.mrf.mxu0
        %v839 = vadd.f32 0.0, %v838
        %840 = vmatmul.f32.gmra.mxu0 %v801
        %v841 = vpop.f32.mrf.mxu0
        %v842 = vadd.f32 0.0, %v841
        %843 = vmatmul.f32.gmra.mxu0 %v804
        %v844 = vpop.f32.mrf.mxu0
        %v845 = vadd.f32 0.0, %v844
        %846 = vmatmul.f32.gmra.mxu0 %v807
        %v847 = vpop.f32.mrf.mxu0
        %v848 = vadd.f32 0.0, %v847
        %849 = vmatmul.f32.gmra.mxu0 %v810
        %v850 = vpop.f32.mrf.mxu0
        %v851 = vadd.f32 0.0, %v850
        %852 = vdwg.mxu0
        %v853 = vadd.f32 %v769, %v830
        %v854 = vadd.f32 %v770, %v833
        %v855 = vadd.f32 %v771, %v836
        %v856 = vadd.f32 %v772, %v839
        %v857 = vadd.f32 %v773, %v842
        %v858 = vadd.f32 %v774, %v845
        %v859 = vadd.f32 %v775, %v848
        %v860 = vadd.f32 %v776, %v851
        %s861 = scalar_lea.vmem %s280, 80
        %v862 = vld [vmem:[%s861] sm:$0xff]
        %v863 = vld [vmem:[%s861 + $0x40] sm:$0xff]
        %v864 = vld [vmem:[%s861 + $0x80] sm:$0xff]
        %v865 = vld [vmem:[%s861 + $0xc0] sm:$0xff]
        %v866 = vld [vmem:[%s861 + $0x100] sm:$0xff]
        %v867 = vld [vmem:[%s861 + $0x140] sm:$0xff]
        %v868 = vld [vmem:[%s861 + $0x180] sm:$0xff]
        %v869 = vld [vmem:[%s861 + $0x1c0] sm:$0xff]
        %s870 = scalar_lea.vmem %s1, 56
        %v871 = vld [vmem:[%s870] sm:$0xff]
        %v873 = vsel %vm312, %v862, 0
        %v876 = vsel %vm312, %v863, 0
        %v879 = vsel %vm312, %v864, 0
        %v882 = vsel %vm312, %v865, 0
        %v885 = vsel %vm312, %v866, 0
        %v888 = vsel %vm312, %v867, 0
        %v891 = vsel %vm312, %v868, 0
        %v894 = vsel %vm312, %v869, 0
        %896 = vmatpush.msra.mxu0 0.0
        %897 = vmatpush.msra.mxu0 0.0
        %898 = vmatpush.msra.mxu0 0.0
        %899 = vmatpush.msra.mxu0 0.0
        %900 = vmatpush.msra.mxu0 0.0
        %901 = vmatpush.msra.mxu0 0.0
        %902 = vmatpush.msra.mxu0 0.0
        %903 = vmatpush.msra.mxu0 0.0
        %904 = vmatpush.msra.mxu0 0.0
        %905 = vmatpush.msra.mxu0 0.0
        %906 = vmatpush.msra.mxu0 0.0
        %907 = vmatpush.msra.mxu0 0.0
        %908 = vmatpush.msra.mxu0 0.0
        %909 = vmatpush.msra.mxu0 0.0
        %910 = vmatpush.msra.mxu0 0.0
        %911 = vmatpush.msra.mxu0 %v871
        %912 = vmatmul.f32.gmra.mxu0 %v873
        %v913 = vpop.f32.mrf.mxu0
        %v914 = vadd.f32 0.0, %v913
        %915 = vmatmul.f32.gmra.mxu0 %v876
        %v916 = vpop.f32.mrf.mxu0
        %v917 = vadd.f32 0.0, %v916
        %918 = vmatmul.f32.gmra.mxu0 %v879
        %v919 = vpop.f32.mrf.mxu0
        %v920 = vadd.f32 0.0, %v919
        %921 = vmatmul.f32.gmra.mxu0 %v882
        %v922 = vpop.f32.mrf.mxu0
        %v923 = vadd.f32 0.0, %v922
        %924 = vmatmul.f32.gmra.mxu0 %v885
        %v925 = vpop.f32.mrf.mxu0
        %v926 = vadd.f32 0.0, %v925
        %927 = vmatmul.f32.gmra.mxu0 %v888
        %v928 = vpop.f32.mrf.mxu0
        %v929 = vadd.f32 0.0, %v928
        %930 = vmatmul.f32.gmra.mxu0 %v891
        %v931 = vpop.f32.mrf.mxu0
        %v932 = vadd.f32 0.0, %v931
        %933 = vmatmul.f32.gmra.mxu0 %v894
        %v934 = vpop.f32.mrf.mxu0
        %v935 = vadd.f32 0.0, %v934
        %936 = vdwg.mxu0
        %v937 = vadd.f32 %v853, %v914
        %v938 = vadd.f32 %v854, %v917
        %v939 = vadd.f32 %v855, %v920
        %v940 = vadd.f32 %v856, %v923
        %v941 = vadd.f32 %v857, %v926
        %v942 = vadd.f32 %v858, %v929
        %v943 = vadd.f32 %v859, %v932
        %v944 = vadd.f32 %v860, %v935
        %v945 = vld [vmem:[%s777 + $0x1] sm:$0xff]
        %v946 = vld [vmem:[%s777 + $0x41] sm:$0xff]
        %v947 = vld [vmem:[%s777 + $0x81] sm:$0xff]
        %v948 = vld [vmem:[%s777 + $0xc1] sm:$0xff]
        %v949 = vld [vmem:[%s777 + $0x101] sm:$0xff]
        %v950 = vld [vmem:[%s777 + $0x141] sm:$0xff]
        %v951 = vld [vmem:[%s777 + $0x181] sm:$0xff]
        %v952 = vld [vmem:[%s777 + $0x1c1] sm:$0xff]
        %s953 = scalar_lea.vmem %s1, 64
        %v954 = vld [vmem:[%s953] sm:$0xff]
        %v956 = vsel %vm312, %v945, 0
        %v959 = vsel %vm312, %v946, 0
        %v962 = vsel %vm312, %v947, 0
        %v965 = vsel %vm312, %v948, 0
        %v968 = vsel %vm312, %v949, 0
        %v971 = vsel %vm312, %v950, 0
        %v974 = vsel %vm312, %v951, 0
        %v977 = vsel %vm312, %v952, 0
        %979 = vmatpush.msra.mxu0 0.0
        %980 = vmatpush.msra.mxu0 0.0
        %981 = vmatpush.msra.mxu0 0.0
        %982 = vmatpush.msra.mxu0 0.0
        %983 = vmatpush.msra.mxu0 0.0
        %984 = vmatpush.msra.mxu0 0.0
        %985 = vmatpush.msra.mxu0 0.0
        %986 = vmatpush.msra.mxu0 0.0
        %987 = vmatpush.msra.mxu0 0.0
        %988 = vmatpush.msra.mxu0 0.0
        %989 = vmatpush.msra.mxu0 0.0
        %990 = vmatpush.msra.mxu0 0.0
        %991 = vmatpush.msra.mxu0 0.0
        %992 = vmatpush.msra.mxu0 0.0
        %993 = vmatpush.msra.mxu0 0.0
        %994 = vmatpush.msra.mxu0 %v954
        %995 = vmatmul.f32.gmra.mxu0 %v956
        %v996 = vpop.f32.mrf.mxu0
        %v997 = vadd.f32 0.0, %v996
        %998 = vmatmul.f32.gmra.mxu0 %v959
        %v999 = vpop.f32.mrf.mxu0
        %v1000 = vadd.f32 0.0, %v999
        %1001 = vmatmul.f32.gmra.mxu0 %v962
        %v1002 = vpop.f32.mrf.mxu0
        %v1003 = vadd.f32 0.0, %v1002
        %1004 = vmatmul.f32.gmra.mxu0 %v965
        %v1005 = vpop.f32.mrf.mxu0
        %v1006 = vadd.f32 0.0, %v1005
        %1007 = vmatmul.f32.gmra.mxu0 %v968
        %v1008 = vpop.f32.mrf.mxu0
        %v1009 = vadd.f32 0.0, %v1008
        %1010 = vmatmul.f32.gmra.mxu0 %v971
        %v1011 = vpop.f32.mrf.mxu0
        %v1012 = vadd.f32 0.0, %v1011
        %1013 = vmatmul.f32.gmra.mxu0 %v974
        %v1014 = vpop.f32.mrf.mxu0
        %v1015 = vadd.f32 0.0, %v1014
        %1016 = vmatmul.f32.gmra.mxu0 %v977
        %v1017 = vpop.f32.mrf.mxu0
        %v1018 = vadd.f32 0.0, %v1017
        %1019 = vdwg.mxu0
        %v1020 = vadd.f32 %v937, %v997
        %v1021 = vadd.f32 %v938, %v1000
        %v1022 = vadd.f32 %v939, %v1003
        %v1023 = vadd.f32 %v940, %v1006
        %v1024 = vadd.f32 %v941, %v1009
        %v1025 = vadd.f32 %v942, %v1012
        %v1026 = vadd.f32 %v943, %v1015
        %v1027 = vadd.f32 %v944, %v1018
        %v1028 = vld [vmem:[%s2] sm:$0x1]
        %v1030 = vperm.slane %v1028, 0
        %v1032 = vadd.f32 %v1020, %v1030
        %v1033 = vadd.f32 %v1021, %v1030
        %v1034 = vadd.f32 %v1022, %v1030
        %v1035 = vadd.f32 %v1023, %v1030
        %v1036 = vadd.f32 %v1024, %v1030
        %v1037 = vadd.f32 %v1025, %v1030
        %v1038 = vadd.f32 %v1026, %v1030
        %v1039 = vadd.f32 %v1027, %v1030
        %v1040 = vmax.f32 %v1032, 0.0
        %v1041 = vmax.f32 %v1033, 0.0
        %v1042 = vmax.f32 %v1034, 0.0
        %v1043 = vmax.f32 %v1035, 0.0
        %v1044 = vmax.f32 %v1036, 0.0
        %v1045 = vmax.f32 %v1037, 0.0
        %v1046 = vmax.f32 %v1038, 0.0
        %v1047 = vmax.f32 %v1039, 0.0
        %1048 = vst [vmem:[%s266] sm:$0xff] %v1040
        %1049 = vst [vmem:[%s266 + $0x8] sm:$0xff] %v1041
        %1050 = vst [vmem:[%s266 + $0x10] sm:$0xff] %v1042
        %1051 = vst [vmem:[%s266 + $0x18] sm:$0xff] %v1043
        %1052 = vst [vmem:[%s266 + $0x20] sm:$0xff] %v1044
        %1053 = vst [vmem:[%s266 + $0x28] sm:$0xff] %v1045
        %1054 = vst [vmem:[%s266 + $0x30] sm:$0xff] %v1046
        %1055 = vst [vmem:[%s266 + $0x38] sm:$0xff] %v1047
        %v1056 = vld [vmem:[%s266] sm:$0xff]
        %v1057 = vld [vmem:[%s266 + $0x8] sm:$0xff]
        %v1058 = vld [vmem:[%s266 + $0x10] sm:$0xff]
        %v1059 = vld [vmem:[%s266 + $0x18] sm:$0xff]
        %v1060 = vld [vmem:[%s266 + $0x20] sm:$0xff]
        %v1061 = vld [vmem:[%s266 + $0x28] sm:$0xff]
        %v1062 = vld [vmem:[%s266 + $0x30] sm:$0xff]
        %v1063 = vld [vmem:[%s266 + $0x38] sm:$0xff]
        %v1064 = vld [vmem:[%s3] sm:$0xff]
        %v1065 = vld [vmem:[%s3 + $0x8] sm:$0xff]
        %v1066 = vld [vmem:[%s3 + $0x10] sm:$0xff]
        %v1067 = vld [vmem:[%s3 + $0x18] sm:$0xff]
        %v1068 = vld [vmem:[%s3 + $0x20] sm:$0xff]
        %v1069 = vld [vmem:[%s3 + $0x28] sm:$0xff]
        %v1070 = vld [vmem:[%s3 + $0x30] sm:$0xff]
        %v1071 = vld [vmem:[%s3 + $0x38] sm:$0xff]
        %v1072 = vld [vmem:[%s3 + $0x40] sm:$0xff]
        %v1073 = vld [vmem:[%s3 + $0x48] sm:$0xff]
        %v1074 = vld [vmem:[%s3 + $0x50] sm:$0xff]
        %v1075 = vld [vmem:[%s3 + $0x58] sm:$0xff]
        %v1076 = vld [vmem:[%s3 + $0x60] sm:$0xff]
        %v1077 = vld [vmem:[%s3 + $0x68] sm:$0xff]
        %v1078 = vld [vmem:[%s3 + $0x70] sm:$0xff]
        %v1079 = vld [vmem:[%s3 + $0x78] sm:$0xff]
        %v1080 = vld [vmem:[%s4] sm:$0x1]
        %v1082 = vperm.slane %v1080, 0
        %1084 = vmatpush.msra.mxu0 %v1079
        %1085 = vmatpush.msra.mxu0 %v1078
        %1086 = vmatpush.msra.mxu0 %v1077
        %1087 = vmatpush.msra.mxu0 %v1076
        %1088 = vmatpush.msra.mxu0 %v1075
        %1089 = vmatpush.msra.mxu0 %v1074
        %1090 = vmatpush.msra.mxu0 %v1073
        %1091 = vmatpush.msra.mxu0 %v1072
        %1092 = vmatpush.msra.mxu0 %v1071
        %1093 = vmatpush.msra.mxu0 %v1070
        %1094 = vmatpush.msra.mxu0 %v1069
        %1095 = vmatpush.msra.mxu0 %v1068
        %1096 = vmatpush.msra.mxu0 %v1067
        %1097 = vmatpush.msra.mxu0 %v1066
        %1098 = vmatpush.msra.mxu0 %v1065
        %1099 = vmatpush.msra.mxu0 %v1064
        %1100 = vmatmul.f32.gmra.mxu0 %v1056
        %v1101 = vpop.f32.mrf.mxu0
        %v1102 = vadd.f32 %v1082, %v1101
        %1103 = vmatmul.f32.gmra.mxu0 %v1057
        %v1104 = vpop.f32.mrf.mxu0
        %v1105 = vadd.f32 %v1082, %v1104
        %1106 = vmatmul.f32.gmra.mxu0 %v1058
        %v1107 = vpop.f32.mrf.mxu0
        %v1108 = vadd.f32 %v1082, %v1107
        %1109 = vmatmul.f32.gmra.mxu0 %v1059
        %v1110 = vpop.f32.mrf.mxu0
        %v1111 = vadd.f32 %v1082, %v1110
        %1112 = vmatmul.f32.gmra.mxu0 %v1060
        %v1113 = vpop.f32.mrf.mxu0
        %v1114 = vadd.f32 %v1082, %v1113
        %1115 = vmatmul.f32.gmra.mxu0 %v1061
        %v1116 = vpop.f32.mrf.mxu0
        %v1117 = vadd.f32 %v1082, %v1116
        %1118 = vmatmul.f32.gmra.mxu0 %v1062
        %v1119 = vpop.f32.mrf.mxu0
        %v1120 = vadd.f32 %v1082, %v1119
        %1121 = vmatmul.f32.gmra.mxu0 %v1063
        %v1122 = vpop.f32.mrf.mxu0
        %v1123 = vadd.f32 %v1082, %v1122
        %1124 = vdwg.mxu0
        %1125 = vst [vmem:[%s289] sm:$0xff] %v1102
        %1126 = vst [vmem:[%s289 + $0x8] sm:$0xff] %v1105
        %1127 = vst [vmem:[%s289 + $0x10] sm:$0xff] %v1108
        %1128 = vst [vmem:[%s289 + $0x18] sm:$0xff] %v1111
        %1129 = vst [vmem:[%s289 + $0x20] sm:$0xff] %v1114
        %1130 = vst [vmem:[%s289 + $0x28] sm:$0xff] %v1117
        %1131 = vst [vmem:[%s289 + $0x30] sm:$0xff] %v1120
        %1132 = vst [vmem:[%s289 + $0x38] sm:$0xff] %v1123
        %s1133 = sand.u32 %s155, 1
        %s1134 = scalar_lea.sflag [#allocation3], %s1133
        %s1135 = sand.u32 %s155, 1
        %s1136 = smul.addr %s1135, 64
        %s1137 = scalar_lea.vmem [#allocation2], %s1136
        %s1138 = sadd.s32 %s25, %s26
        %s1139 = smul.u32 8, %s1138
        %p1140 = scmp.lt.s32.totalorder %s1139, 15
        %s1141 = scalar_select %p1140, %s1139, 15
        %s1142 = smul.addr %s1141, 8
        %s1143 = scalar_lea.vmem %s6, %s1142
        // Predicated region
        $region41: #{navigator_branch_forward.1} parent=39 // pred_check
          %p1144 = pneg %p165
        $region42: #{navigator_branch_forward.1} parent=39 // pred_check_branch
          %1146 = sbr.rel (%p1144) target = $region44
        $region43: #{navigator_branch_forward.1} parent=39 // pred_region
          %s1147 = sadd.s32 %s25, %s26
          %s1148 = smul.u32 8, %s1147
          %1150 = vsyncadd %s1134, 0
          %s1151 = smul.addr %s1148, 8
          %s1152 = scalar_lea.hbm %s5, %s1151
          %s1153 = sshll.u32 %s1137, 4
          %s1154 = int_to_ptr.vmem [resolvable:$true] %s1153
          %s1155 = sshll.u32 %s1152, 4
          %s1156 = int_to_ptr.hbm [resolvable:$true] %s1155
          %1161 = dma.vmem_to_hbm [thread:$0]  %s1154, 1024, %s1156, %s1134, 128, 128, 8
        $region44: #{navigator_branch_forward.1} parent=39 // pred_fallthru
          _
        // Predicated region
        $region45: #{navigator_branch_forward.1} parent=39 // pred_check
          %p1162 = pneg %p193
        $region46: #{navigator_branch_forward.1} parent=39 // pred_check_branch
          %1164 = sbr.rel (%p1162) target = $region48
        $region47: #{navigator_branch_forward.1} parent=39 // pred_region
          %s1165 = sadd.s32 %s25, %s26
          %s1166 = smul.u32 8, %s1165
        $region48: #{navigator_branch_forward.1} parent=39 // pred_fallthru
          _
      $region40: #{navigator_branch_forward.1} parent=5 // pred_fallthru
        _
      %p1167 = scmp.le.s32.totalorder 2, %s16
      // Predicated region
      $region49: #{navigator_branch_forward.1} parent=5 // pred_check
        %p1168 = pneg %p1167
      $region50: #{navigator_branch_forward.1} parent=5 // pred_check_branch
        %1170 = sbr.rel (%p1168) target = $region52
      $region51: #{navigator_branch_forward.1} parent=5 // pred_region
        %s1171 = ssub.s32 %s16, 2
        // Predicated region
        $region53: #{navigator_branch_forward.1} parent=51 // pred_check
          %p1172 = pneg %p171
        $region54: #{navigator_branch_forward.1} parent=51 // pred_check_branch
          %1174 = sbr.rel (%p1172) target = $region56
        $region55: #{navigator_branch_forward.1} parent=51 // pred_region
          %s1175 = sand.u32 %s156, 1
          %s1176 = scalar_lea.sflag [#allocation3], %s1175
          %s1177 = sand.u32 %s156, 1
          %s1178 = smul.addr %s1177, 64
          %s1179 = scalar_lea.vmem [#allocation2], %s1178
          %1181 = dma.done %s1176, 1024
        $region56: #{navigator_branch_forward.1} parent=51 // pred_fallthru
          _
        // Predicated region
        $region57: #{navigator_branch_forward.1} parent=51 // pred_check
          %p1182 = pneg %p199
        $region58: #{navigator_branch_forward.1} parent=51 // pred_check_branch
          %1184 = sbr.rel (%p1182) target = $region60
        $region59: #{navigator_branch_forward.1} parent=51 // pred_region
          %s1185 = sadd.s32 %s27, %s28
          %s1186 = smul.u32 8, %s1185
          %p1187 = scmp.lt.s32.totalorder %s1186, 15
          %s1188 = scalar_select %p1187, %s1186, 15
          %s1189 = smul.addr %s1188, 8
          %s1190 = scalar_lea.vmem %s6, %s1189
        $region60: #{navigator_branch_forward.1} parent=51 // pred_fallthru
          _
      $region52: #{navigator_branch_forward.1} parent=5 // pred_fallthru
        _
    $region6: #{navigator_branch_forward.1} parent=1 // loop_footer
      %s20 = sadd.s32 1, %s16
    $region7: #{navigator_branch_forward.1} parent=1 // loop_footer_branch
      %15 = sbr.rel target = $region3
    $region8: #{navigator_branch_forward.1} parent=1 // loop_exit
      _
    %1191 = vsyncpa [#allocation3], 1
    %s1192 = scalar_lea.sflag [#allocation3], 1
    %1193 = vsyncpa %s1192, 1

</llo_original>
